<compile_context>
chip_gen: v5e
topology: v5e:2x2
jax: 0.10.0
libtpu: 0.0.40
codegen_flags: <defaults>
</compile_context>

<pallas_src>
import jax
import jax.numpy as jnp
from jax.experimental import pallas as pl
from jax.experimental.pallas import tpu as pltpu


def _round_up(x, m):
    return ((x + m - 1) // m) * m


def actor_critic_kernel(x_ref, w1_ref, b1_ref, w2_ref, b2_ref,
                        wh_ref, bh_ref, madd_ref, msel_ref, out_ref):
    # feature_layer: Linear -> ReLU -> Linear -> ReLU (hidden dim lane-padded).
    # Activations stay in the weight/compute dtype for the MXU; accumulate f32.
    x = x_ref[...]
    h1 = jnp.dot(x, w1_ref[...], preferred_element_type=jnp.float32)
    h1 = jnp.maximum(h1 + b1_ref[...], 0.0)
    h2 = jnp.dot(h1.astype(w2_ref.dtype), w2_ref[...],
                 preferred_element_type=jnp.float32)
    h2 = jnp.maximum(h2 + b2_ref[...], 0.0)

    # fused actor+critic head: lanes [0, A) = actor logits, lane A = value,
    # lanes > A are exactly zero (zero-padded weights & bias).
    z = jnp.dot(h2.astype(wh_ref.dtype), wh_ref[...],
                preferred_element_type=jnp.float32) + bh_ref[...]

    # softmax restricted to the actor lanes via a precomputed additive mask
    # (0 on logit lanes, -1e30 elsewhere) -> masked lanes underflow to exact 0.
    zl = z + madd_ref[...]
    m = jnp.max(zl, axis=-1, keepdims=True)
    e = jnp.exp(zl - m)
    denom = jnp.sum(e, axis=-1, keepdims=True)
    probs = e * pl.reciprocal(denom)          # exact: probs sum to 1 for PPO

    # single lane-dense store: probs | value | zeros
    # (msel = 1 on lanes >= A; z is already 0 on lanes > A)
    out_ref[...] = (probs + z * msel_ref[...]).astype(out_ref.dtype)


def prepare_params(params, *, compute_dtype=jnp.float32):
    """One-time padding / fusion of the PyTorch-style weights.

    Hoisted out of the forward so the per-call HLO is just the pallas_call.
    """
    S, H = params["w1"].shape
    A = params["wa"].shape[1]
    HP = _round_up(max(H, 128), 128)    # lane-dense hidden dim (keep at 128!)
    NP = _round_up(A + 1, 128)          # lane-dense fused-head output width
    f32 = jnp.float32

    def pad2(a, rows, cols):
        return jnp.pad(a, ((0, rows - a.shape[0]), (0, cols - a.shape[1])))

    col = jnp.arange(NP)
    prepared = dict(
        w1=pad2(params["w1"].astype(compute_dtype), S, HP),
        b1=pad2(params["b1"].astype(f32), 1, HP),
        w2=pad2(params["w2"].astype(compute_dtype), HP, HP),
        b2=pad2(params["b2"].astype(f32), 1, HP),
        wh=pad2(jnp.concatenate([params["wa"], params["wc"]], axis=1)
                .astype(compute_dtype), HP, NP),
        bh=pad2(jnp.concatenate([params["ba"], params["bc"]], axis=1)
                .astype(f32), 1, NP),
        mask_add=jnp.where(col < A, 0.0, -1e30).astype(f32)[None, :],
        mask_sel=jnp.where(col < A, 0.0, 1.0).astype(f32)[None, :],
    )
    meta = dict(state_size=S, action_size=A, HP=HP, NP=NP,
                compute_dtype=compute_dtype)
    return prepared, meta


def actor_critic_forward(state, prepared, meta, *, batch_tile=None,
                         out_dtype=jnp.float32):
    """state: (B, state_size). Returns (action_probs (B, A), value (B, 1)) f32.

    Set compute_dtype=bf16 in prepare_params (and optionally out_dtype=bf16 to
    cut output writeback) on v6e/v7x to halve HBM traffic; dots still
    accumulate in f32.
    """
    B, S = state.shape
    assert S == meta["state_size"]
    A = meta["action_size"]
    HP, NP = meta["HP"], meta["NP"]
    compute_dtype = meta["compute_dtype"]

    # --- batch tile: multiple of 128 (unmasked stores even at bf16); single
    # step up to 1024 rows, otherwise an even balanced step count (both v7x
    # TCs busy) with tiles capped at 4096 rows (few steps on 1-TC v5e/v6e).
    if batch_tile is None:
        if B <= 1024:
            batch_tile = _round_up(B, 128)
        else:
            steps = 2
            while _round_up(pl.cdiv(B, steps), 128) > 4096:
                steps += 2
            batch_tile = _round_up(pl.cdiv(B, steps), 128)
    batch_tile = max(128, _round_up(int(batch_tile), 128))
    Bp = _round_up(B, batch_tile)
    grid = (Bp // batch_tile,)

    x = state.astype(compute_dtype)
    if Bp != B:
        x = jnp.pad(x, ((0, Bp - B), (0, 0)))

    w_item = jnp.dtype(compute_dtype).itemsize
    o_item = jnp.dtype(out_dtype).itemsize
    cost = pl.CostEstimate(
        flops=2 * Bp * (S * HP + HP * HP + HP * NP),
        transcendentals=Bp * NP,
        bytes_accessed=(Bp * S * w_item + Bp * NP * o_item
                        + (S * HP + HP * HP + HP * NP) * w_item
                        + (2 * HP + 3 * NP) * 4),
    )

    full = lambda shape: pl.BlockSpec(shape, lambda i: (0, 0))  # resident inputs

    out = pl.pallas_call(
        actor_critic_kernel,
        out_shape=jax.ShapeDtypeStruct((Bp, NP), out_dtype),
        grid=grid,
        in_specs=[
            pl.BlockSpec((batch_tile, S), lambda i: (i, 0)),   # state tile
            full((S, HP)), full((1, HP)),                       # layer 1
            full((HP, HP)), full((1, HP)),                      # layer 2
            full((HP, NP)), full((1, NP)),                      # fused head
            full((1, NP)), full((1, NP)),                       # softmax masks
        ],
        out_specs=pl.BlockSpec((batch_tile, NP), lambda i: (i, 0)),
        compiler_params=pltpu.CompilerParams(
            dimension_semantics=("parallel",)),
        cost_estimate=cost,
    )(x, prepared["w1"], prepared["b1"], prepared["w2"], prepared["b2"],
      prepared["wh"], prepared["bh"], prepared["mask_add"], prepared["mask_sel"])

    probs = out[:B, :A].astype(jnp.float32)
    value = out[:B, A:A + 1].astype(jnp.float32)
    return probs, value


def init_params(key, state_size, action_size, hidden=64):
    """PyTorch nn.Linear default init U(-1/sqrt(fan_in), 1/sqrt(fan_in)).
    Weights stored as (in_features, out_features); biases as (1, out_features)."""
    def linear(k, fan_in, fan_out):
        kw, kb = jax.random.split(k)
        bound = 1.0 / jnp.sqrt(fan_in)
        w = jax.random.uniform(kw, (fan_in, fan_out), jnp.float32, -bound, bound)
        b = jax.random.uniform(kb, (1, fan_out), jnp.float32, -bound, bound)
        return w, b

    k1, k2, k3, k4 = jax.random.split(key, 4)
    w1, b1 = linear(k1, state_size, hidden)
    w2, b2 = linear(k2, hidden, hidden)
    wa, ba = linear(k3, hidden, action_size)
    wc, bc = linear(k4, hidden, 1)
    return dict(w1=w1, b1=b1, w2=w2, b2=b2, wa=wa, ba=ba, wc=wc, bc=bc)


def reference_forward(state, p):
    h1 = jnp.maximum(state @ p["w1"] + p["b1"], 0.0)
    h2 = jnp.maximum(h1 @ p["w2"] + p["b2"], 0.0)
    probs = jax.nn.softmax(h2 @ p["wa"] + p["ba"], axis=-1)
    value = h2 @ p["wc"] + p["bc"]
    return probs, value


def _check(state, params, prepared, meta, action_size):
    probs, value = actor_critic_forward(state, prepared, meta)
    probs, value = jax.block_until_ready((probs, value))
    ref_probs, ref_value = reference_forward(state, params)
    B = state.shape[0]
    assert probs.shape == (B, action_size)
    assert value.shape == (B, 1)
    assert jnp.allclose(probs, ref_probs, atol=1e-5, rtol=1e-5)
    assert jnp.allclose(jnp.sum(probs, axis=-1), 1.0, atol=1e-5)
    assert jnp.allclose(value, ref_value, atol=1e-4, rtol=1e-4)


if __name__ == "__main__":
    key = jax.random.PRNGKey(0)
    k_state, k_params, k_big = jax.random.split(key, 3)

    state_size, action_size = 16, 8
    params = init_params(k_params, state_size, action_size)
    prepared, meta = prepare_params(params, compute_dtype=jnp.float32)

    # small batch (single grid step)
    state_small = jax.random.normal(k_state, (8, state_size), jnp.float32)
    _check(state_small, params, prepared, meta, action_size)

    # larger, non-tile-multiple batch (exercises batch padding)
    state_big = jax.random.normal(k_big, (300, state_size), jnp.float32)
    _check(state_big, params, prepared, meta, action_size)

    print("KERNEL_OK")
</pallas_src>

<mosaic_0001>
module attributes {stable_mosaic.version = 11 : i64} {
  func.func @actor_critic_kernel(%arg0: i32, %arg1: memref<128x16xf32, #tpu.memory_space<vmem>>, %arg2: memref<16x128xf32, #tpu.memory_space<vmem>>, %arg3: memref<1x128xf32, #tpu.memory_space<vmem>>, %arg4: memref<128x128xf32, #tpu.memory_space<vmem>>, %arg5: memref<1x128xf32, #tpu.memory_space<vmem>>, %arg6: memref<128x128xf32, #tpu.memory_space<vmem>>, %arg7: memref<1x128xf32, #tpu.memory_space<vmem>>, %arg8: memref<1x128xf32, #tpu.memory_space<vmem>>, %arg9: memref<1x128xf32, #tpu.memory_space<vmem>>, %arg10: memref<128x128xf32, #tpu.memory_space<vmem>>) attributes {dimension_semantics = [#tpu.dimension_semantics<parallel>], iteration_bounds = array<i64: 1>, scalar_prefetch = 0 : i64, scratch_operands = 0 : i64, tpu.core_type = #tpu.core_type<tc>, window_params = [{transform_indices = @transform_0, window_bounds = array<i64: 128, 16>}, {pipeline_mode = #tpu.pipeline_mode<synchronous>, transform_indices = @transform_1, window_bounds = array<i64: 16, 128>}, {pipeline_mode = #tpu.pipeline_mode<synchronous>, transform_indices = @transform_2, window_bounds = array<i64: 1, 128>}, {pipeline_mode = #tpu.pipeline_mode<synchronous>, transform_indices = @transform_3, window_bounds = array<i64: 128, 128>}, {pipeline_mode = #tpu.pipeline_mode<synchronous>, transform_indices = @transform_4, window_bounds = array<i64: 1, 128>}, {pipeline_mode = #tpu.pipeline_mode<synchronous>, transform_indices = @transform_5, window_bounds = array<i64: 128, 128>}, {pipeline_mode = #tpu.pipeline_mode<synchronous>, transform_indices = @transform_6, window_bounds = array<i64: 1, 128>}, {pipeline_mode = #tpu.pipeline_mode<synchronous>, transform_indices = @transform_7, window_bounds = array<i64: 1, 128>}, {pipeline_mode = #tpu.pipeline_mode<synchronous>, transform_indices = @transform_8, window_bounds = array<i64: 1, 128>}, {transform_indices = @transform_9, window_bounds = array<i64: 128, 128>}]} {
    %c0 = arith.constant 0 : index
    %c0_0 = arith.constant 0 : index
    %0 = vector.load %arg1[%c0, %c0_0] : memref<128x16xf32, #tpu.memory_space<vmem>>, vector<128x16xf32>
    %c0_1 = arith.constant 0 : index
    %c0_2 = arith.constant 0 : index
    %1 = vector.load %arg2[%c0_1, %c0_2] : memref<16x128xf32, #tpu.memory_space<vmem>>, vector<16x128xf32>
    %cst = arith.constant dense<0.000000e+00> : vector<128x128xf32>
    %2 = tpu.matmul %0, %1, %cst {dimension_numbers = #tpu.dot_dimension_numbers<[1], [0], [0], [1], [0, 0, 1, 1], [], []>} : vector<128x16xf32>, vector<16x128xf32>, vector<128x128xf32> -> vector<128x128xf32>
    %c0_3 = arith.constant 0 : index
    %c0_4 = arith.constant 0 : index
    %3 = vector.load %arg3[%c0_3, %c0_4] : memref<1x128xf32, #tpu.memory_space<vmem>>, vector<1x128xf32>
    %4 = vector.broadcast %3 : vector<1x128xf32> to vector<128x128xf32>
    %5 = arith.addf %2, %4 : vector<128x128xf32>
    %cst_5 = arith.constant 0.000000e+00 : f32
    %6 = vector.broadcast %cst_5 : f32 to vector<128x128xf32>
    %7 = arith.maximumf %5, %6 : vector<128x128xf32>
    %c0_6 = arith.constant 0 : index
    %c0_7 = arith.constant 0 : index
    %8 = vector.load %arg4[%c0_6, %c0_7] : memref<128x128xf32, #tpu.memory_space<vmem>>, vector<128x128xf32>
    %cst_8 = arith.constant dense<0.000000e+00> : vector<128x128xf32>
    %9 = tpu.matmul %7, %8, %cst_8 {dimension_numbers = #tpu.dot_dimension_numbers<[1], [0], [0], [1], [0, 0, 1, 1], [], []>} : vector<128x128xf32>, vector<128x128xf32>, vector<128x128xf32> -> vector<128x128xf32>
    %c0_9 = arith.constant 0 : index
    %c0_10 = arith.constant 0 : index
    %10 = vector.load %arg5[%c0_9, %c0_10] : memref<1x128xf32, #tpu.memory_space<vmem>>, vector<1x128xf32>
    %11 = vector.broadcast %10 : vector<1x128xf32> to vector<128x128xf32>
    %12 = arith.addf %9, %11 : vector<128x128xf32>
    %cst_11 = arith.constant 0.000000e+00 : f32
    %13 = vector.broadcast %cst_11 : f32 to vector<128x128xf32>
    %14 = arith.maximumf %12, %13 : vector<128x128xf32>
    %c0_12 = arith.constant 0 : index
    %c0_13 = arith.constant 0 : index
    %15 = vector.load %arg6[%c0_12, %c0_13] : memref<128x128xf32, #tpu.memory_space<vmem>>, vector<128x128xf32>
    %cst_14 = arith.constant dense<0.000000e+00> : vector<128x128xf32>
    %16 = tpu.matmul %14, %15, %cst_14 {dimension_numbers = #tpu.dot_dimension_numbers<[1], [0], [0], [1], [0, 0, 1, 1], [], []>} : vector<128x128xf32>, vector<128x128xf32>, vector<128x128xf32> -> vector<128x128xf32>
    %c0_15 = arith.constant 0 : index
    %c0_16 = arith.constant 0 : index
    %17 = vector.load %arg7[%c0_15, %c0_16] : memref<1x128xf32, #tpu.memory_space<vmem>>, vector<1x128xf32>
    %18 = vector.broadcast %17 : vector<1x128xf32> to vector<128x128xf32>
    %19 = arith.addf %16, %18 : vector<128x128xf32>
    %c0_17 = arith.constant 0 : index
    %c0_18 = arith.constant 0 : index
    %20 = vector.load %arg8[%c0_17, %c0_18] : memref<1x128xf32, #tpu.memory_space<vmem>>, vector<1x128xf32>
    %21 = vector.broadcast %20 : vector<1x128xf32> to vector<128x128xf32>
    %22 = arith.addf %19, %21 : vector<128x128xf32>
    %cst_19 = arith.constant dense<0xFF800000> : vector<128xf32>
    %23 = vector.multi_reduction <maximumf>, %22, %cst_19 [1] : vector<128x128xf32> to vector<128xf32>
    %24 = vector.shape_cast %23 : vector<128xf32> to vector<128x1xf32>
    %25 = vector.broadcast %24 : vector<128x1xf32> to vector<128x128xf32>
    %26 = arith.subf %22, %25 : vector<128x128xf32>
    %27 = math.exp %26 : vector<128x128xf32>
    %cst_20 = arith.constant dense<0.000000e+00> : vector<128xf32>
    %28 = vector.multi_reduction <add>, %27, %cst_20 [1] : vector<128x128xf32> to vector<128xf32>
    %29 = vector.shape_cast %28 : vector<128xf32> to vector<128x1xf32>
    %30 = tpu.reciprocal %29 : vector<128x1xf32> -> vector<128x1xf32>
    %31 = vector.broadcast %30 : vector<128x1xf32> to vector<128x128xf32>
    %32 = arith.mulf %27, %31 : vector<128x128xf32>
    %c0_21 = arith.constant 0 : index
    %c0_22 = arith.constant 0 : index
    %33 = vector.load %arg9[%c0_21, %c0_22] : memref<1x128xf32, #tpu.memory_space<vmem>>, vector<1x128xf32>
    %34 = vector.broadcast %33 : vector<1x128xf32> to vector<128x128xf32>
    %35 = arith.mulf %19, %34 : vector<128x128xf32>
    %36 = arith.addf %32, %35 : vector<128x128xf32>
    %c0_23 = arith.constant 0 : index
    %c0_24 = arith.constant 0 : index
    %37 = vector.load %arg10[%c0_23, %c0_24] : memref<128x128xf32, #tpu.memory_space<vmem>>, vector<128x128xf32>
    tpu.vector_store %arg10[%c0_23, %c0_24], %36 {strides = array<i32>} : memref<128x128xf32, #tpu.memory_space<vmem>>, vector<128x128xf32>,
    return
  }
  func.func @transform_0(%arg0: i32) -> (i32, i32) {
    %c0_i32 = arith.constant 0 : i32
    %c0_i32_0 = arith.constant 0 : i32
    return %arg0, %c0_i32 : i32, i32
  }
  func.func @transform_1(%arg0: i32) -> (i32, i32) {
    %c0_i32 = arith.constant 0 : i32
    %c0_i32_0 = arith.constant 0 : i32
    %c0_i32_1 = arith.constant 0 : i32
    return %c0_i32, %c0_i32_0 : i32, i32
  }
  func.func @transform_2(%arg0: i32) -> (i32, i32) {
    %c0_i32 = arith.constant 0 : i32
    %c0_i32_0 = arith.constant 0 : i32
    %c0_i32_1 = arith.constant 0 : i32
    return %c0_i32, %c0_i32_0 : i32, i32
  }
  func.func @transform_3(%arg0: i32) -> (i32, i32) {
    %c0_i32 = arith.constant 0 : i32
    %c0_i32_0 = arith.constant 0 : i32
    %c0_i32_1 = arith.constant 0 : i32
    return %c0_i32, %c0_i32_0 : i32, i32
  }
  func.func @transform_4(%arg0: i32) -> (i32, i32) {
    %c0_i32 = arith.constant 0 : i32
    %c0_i32_0 = arith.constant 0 : i32
    %c0_i32_1 = arith.constant 0 : i32
    return %c0_i32, %c0_i32_0 : i32, i32
  }
  func.func @transform_5(%arg0: i32) -> (i32, i32) {
    %c0_i32 = arith.constant 0 : i32
    %c0_i32_0 = arith.constant 0 : i32
    %c0_i32_1 = arith.constant 0 : i32
    return %c0_i32, %c0_i32_0 : i32, i32
  }
  func.func @transform_6(%arg0: i32) -> (i32, i32) {
    %c0_i32 = arith.constant 0 : i32
    %c0_i32_0 = arith.constant 0 : i32
    %c0_i32_1 = arith.constant 0 : i32
    return %c0_i32, %c0_i32_0 : i32, i32
  }
  func.func @transform_7(%arg0: i32) -> (i32, i32) {
    %c0_i32 = arith.constant 0 : i32
    %c0_i32_0 = arith.constant 0 : i32
    %c0_i32_1 = arith.constant 0 : i32
    return %c0_i32, %c0_i32_0 : i32, i32
  }
  func.func @transform_8(%arg0: i32) -> (i32, i32) {
    %c0_i32 = arith.constant 0 : i32
    %c0_i32_0 = arith.constant 0 : i32
    %c0_i32_1 = arith.constant 0 : i32
    return %c0_i32, %c0_i32_0 : i32, i32
  }
  func.func @transform_9(%arg0: i32) -> (i32, i32) {
    %c0_i32 = arith.constant 0 : i32
    %c0_i32_0 = arith.constant 0 : i32
    return %arg0, %c0_i32 : i32, i32
  }
}

</mosaic_0001>

<llo_original>
// kernel: tpu_custom_call.1
$region0: #{tpu_custom_call.1}
  #allocation0 [shape = 'u32[]', space=smem, size = 0x4, offset = 0x4, fixed_abs, tag = 'smem constant byte address 0x4 - core index']
  #allocation1 [shape = 'u32[72,128]{1,0:T(1,128)}', space=vmem, size = 0x9000, scoped, tag = 'internal scratch']
  %s0 = inlined_call_operand.vmem [shape: f32[128,16], index: 0, kind: input, shape index: {}]
  %s1 = inlined_call_operand.vmem [shape: f32[16,128], index: 1, kind: input, shape index: {}]
  %s2 = inlined_call_operand.vmem [shape: f32[1,128], index: 2, kind: input, shape index: {}]
  %s3 = inlined_call_operand.vmem [shape: f32[128,128], index: 3, kind: input, shape index: {}]
  %s4 = inlined_call_operand.vmem [shape: f32[1,128], index: 4, kind: input, shape index: {}]
  %s5 = inlined_call_operand.hbm [shape: f32[128,128], index: 5, kind: input, shape index: {}]
  %s6 = inlined_call_operand.vmem [shape: f32[1,128], index: 6, kind: input, shape index: {}]
  %s7 = inlined_call_operand.vmem [shape: f32[1,128], index: 7, kind: input, shape index: {}]
  %s8 = inlined_call_operand.vmem [shape: f32[1,128], index: 8, kind: input, shape index: {}]
  %s9 = inlined_call_operand.hbm [shape: f32[128,128], index: 9, kind: output, shape index: {}]
  %s10 = sld [smem:[#allocation0]]
  $region50: #{tpu_custom_call.1} parent=0
    _
  %s12 = ssub.s32 1, %s10
  %s13 = scalar_select 0, %s12, %s10
  $region1: #{tpu_custom_call.1} parent=0
    #allocation2 [shape = 'u8[65536]{0}', space=vmem, size = 0x10000, scoped, tag = 'input window, operand 5, single buffered']
    #allocation3 [shape = 's32[1]{0}', space=sflag, size = 0x4, scoped, tag = 'scoped memory for tpu_custom_call.1']
    #allocation4 [shape = 's32[1]{0}', space=sflag, size = 0x4, scoped, tag = 'scoped memory for tpu_custom_call.1']
    #allocation5 [shape = 'u8[65536]{0}', space=vmem, size = 0x10000, scoped, tag = 'output window, operand 0, single buffered']
    %14 = vsyncpa [#allocation3], 0
    %15 = vsyncpa [#allocation4], 0
    // Predicated region
    $region2: #{tpu_custom_call.1} parent=1 // pred_check
      _
    $region3: #{tpu_custom_call.1} parent=1 // pred_check_branch
      %17 = sbr.rel (0) target = $region5
    $region4: #{tpu_custom_call.1} parent=1 // pred_region
      _
    $region5: #{tpu_custom_call.1} parent=1 // pred_fallthru
      _
    // Predicated region
    $region6: #{tpu_custom_call.1} parent=1 // pred_check
      _
    $region7: #{tpu_custom_call.1} parent=1 // pred_check_branch
      %19 = sbr.rel (0) target = $region9
    $region8: #{tpu_custom_call.1} parent=1 // pred_region
      _
    $region9: #{tpu_custom_call.1} parent=1 // pred_fallthru
      _
    // Predicated region
    $region10: #{tpu_custom_call.1} parent=1 // pred_check
      _
    $region11: #{tpu_custom_call.1} parent=1 // pred_check_branch
      %21 = sbr.rel (0) target = $region13
    $region12: #{tpu_custom_call.1} parent=1 // pred_region
      _
    $region13: #{tpu_custom_call.1} parent=1 // pred_fallthru
      _
    // Predicated region
    $region14: #{tpu_custom_call.1} parent=1 // pred_check
      _
    $region15: #{tpu_custom_call.1} parent=1 // pred_check_branch
      %23 = sbr.rel (0) target = $region17
    $region16: #{tpu_custom_call.1} parent=1 // pred_region
      _
    $region17: #{tpu_custom_call.1} parent=1 // pred_fallthru
      _
    // Predicated region
    $region18: #{tpu_custom_call.1} parent=1 // pred_check
      _
    $region19: #{tpu_custom_call.1} parent=1 // pred_check_branch
      %25 = sbr.rel (0) target = $region21
    $region20: #{tpu_custom_call.1} parent=1 // pred_region
      _
    $region21: #{tpu_custom_call.1} parent=1 // pred_fallthru
      _
    // Predicated region
    $region22: #{tpu_custom_call.1} parent=1 // pred_check
      _
    $region23: #{tpu_custom_call.1} parent=1 // pred_check_branch
      %27 = sbr.rel (0) target = $region25
    $region24: #{tpu_custom_call.1} parent=1 // pred_region
      %29 = vsyncadd [#allocation3], 0
      %s30 = sshll.u32 %s5, 4
      %s31 = int_to_ptr.hbm [resolvable:$true] %s30
      %s32 = sshll.u32 [#allocation2], 4
      %s33 = int_to_ptr.vmem [resolvable:$true] %s32
      %38 = dma.hbm_to_vmem [thread:$0]  %s31, 2048, %s33, [#allocation3], 128, 128, 8
    $region25: #{tpu_custom_call.1} parent=1 // pred_fallthru
      _
    // Predicated region
    $region26: #{tpu_custom_call.1} parent=1 // pred_check
      _
    $region27: #{tpu_custom_call.1} parent=1 // pred_check_branch
      %40 = sbr.rel (0) target = $region29
    $region28: #{tpu_custom_call.1} parent=1 // pred_region
      _
    $region29: #{tpu_custom_call.1} parent=1 // pred_fallthru
      _
    // Predicated region
    $region30: #{tpu_custom_call.1} parent=1 // pred_check
      _
    $region31: #{tpu_custom_call.1} parent=1 // pred_check_branch
      %42 = sbr.rel (0) target = $region33
    $region32: #{tpu_custom_call.1} parent=1 // pred_region
      _
    $region33: #{tpu_custom_call.1} parent=1 // pred_fallthru
      _
    // Predicated region
    $region34: #{tpu_custom_call.1} parent=1 // pred_check
      _
    $region35: #{tpu_custom_call.1} parent=1 // pred_check_branch
      %44 = sbr.rel (0) target = $region37
    $region36: #{tpu_custom_call.1} parent=1 // pred_region
      _
    $region37: #{tpu_custom_call.1} parent=1 // pred_fallthru
      _
    // Predicated region
    $region38: #{tpu_custom_call.1} parent=1 // pred_check
      _
    $region39: #{tpu_custom_call.1} parent=1 // pred_check_branch
      %46 = sbr.rel (0) target = $region41
    $region40: #{tpu_custom_call.1} parent=1 // pred_region
      %48 = dma.done [#allocation3], 2048
    $region41: #{tpu_custom_call.1} parent=1 // pred_fallthru
      _
    %v49 = vld [vmem:[%s0] sm:$0xff]
    %v50 = vld [vmem:[%s0 + $0x8] sm:$0xff]
    %v51 = vld [vmem:[%s0 + $0x10] sm:$0xff]
    %v52 = vld [vmem:[%s0 + $0x18] sm:$0xff]
    %v53 = vld [vmem:[%s0 + $0x20] sm:$0xff]
    %v54 = vld [vmem:[%s0 + $0x28] sm:$0xff]
    %v55 = vld [vmem:[%s0 + $0x30] sm:$0xff]
    %v56 = vld [vmem:[%s0 + $0x38] sm:$0xff]
    %v57 = vld [vmem:[%s0 + $0x40] sm:$0xff]
    %v58 = vld [vmem:[%s0 + $0x48] sm:$0xff]
    %v59 = vld [vmem:[%s0 + $0x50] sm:$0xff]
    %v60 = vld [vmem:[%s0 + $0x58] sm:$0xff]
    %v61 = vld [vmem:[%s0 + $0x60] sm:$0xff]
    %v62 = vld [vmem:[%s0 + $0x68] sm:$0xff]
    %v63 = vld [vmem:[%s0 + $0x70] sm:$0xff]
    %v64 = vld [vmem:[%s0 + $0x78] sm:$0xff]
    %v65 = vld [vmem:[%s1] sm:$0xff]
    %v66 = vld [vmem:[%s1 + $0x8] sm:$0xff]
    %v67 = vld [vmem:[%s2] sm:$0x1]
    %v69 = vperm.slane %v67, 0
    %vm71 = vcmask 130048
    %v73 = vsel %vm71, %v49, 0
    %v76 = vsel %vm71, %v50, 0
    %v79 = vsel %vm71, %v51, 0
    %v82 = vsel %vm71, %v52, 0
    %v85 = vsel %vm71, %v53, 0
    %v88 = vsel %vm71, %v54, 0
    %v91 = vsel %vm71, %v55, 0
    %v94 = vsel %vm71, %v56, 0
    %v97 = vsel %vm71, %v57, 0
    %v100 = vsel %vm71, %v58, 0
    %v103 = vsel %vm71, %v59, 0
    %v106 = vsel %vm71, %v60, 0
    %v109 = vsel %vm71, %v61, 0
    %v112 = vsel %vm71, %v62, 0
    %v115 = vsel %vm71, %v63, 0
    %v118 = vsel %vm71, %v64, 0
    %120 = vmatpush.msra.mxu0 0.0
    %121 = vmatpush.msra.mxu0 0.0
    %122 = vmatpush.msra.mxu0 0.0
    %123 = vmatpush.msra.mxu0 0.0
    %124 = vmatpush.msra.mxu0 0.0
    %125 = vmatpush.msra.mxu0 0.0
    %126 = vmatpush.msra.mxu0 0.0
    %127 = vmatpush.msra.mxu0 0.0
    %128 = vmatpush.msra.mxu0 0.0
    %129 = vmatpush.msra.mxu0 0.0
    %130 = vmatpush.msra.mxu0 0.0
    %131 = vmatpush.msra.mxu0 0.0
    %132 = vmatpush.msra.mxu0 0.0
    %133 = vmatpush.msra.mxu0 0.0
    %134 = vmatpush.msra.mxu0 %v66
    %135 = vmatpush.msra.mxu0 %v65
    %136 = vmatmul.f32.gmra.mxu0 %v73
    %v137 = vpop.f32.mrf.mxu0
    %v138 = vadd.f32 %v69, %v137
    %139 = vmatmul.f32.gmra.mxu0 %v76
    %v140 = vpop.f32.mrf.mxu0
    %v141 = vadd.f32 %v69, %v140
    %142 = vmatmul.f32.gmra.mxu0 %v79
    %v143 = vpop.f32.mrf.mxu0
    %v144 = vadd.f32 %v69, %v143
    %145 = vmatmul.f32.gmra.mxu0 %v82
    %v146 = vpop.f32.mrf.mxu0
    %v147 = vadd.f32 %v69, %v146
    %148 = vmatmul.f32.gmra.mxu0 %v85
    %v149 = vpop.f32.mrf.mxu0
    %v150 = vadd.f32 %v69, %v149
    %151 = vmatmul.f32.gmra.mxu0 %v88
    %v152 = vpop.f32.mrf.mxu0
    %v153 = vadd.f32 %v69, %v152
    %154 = vmatmul.f32.gmra.mxu0 %v91
    %v155 = vpop.f32.mrf.mxu0
    %v156 = vadd.f32 %v69, %v155
    %157 = vmatmul.f32.gmra.mxu0 %v94
    %v158 = vpop.f32.mrf.mxu0
    %v159 = vadd.f32 %v69, %v158
    %160 = vmatmul.f32.gmra.mxu0 %v97
    %v161 = vpop.f32.mrf.mxu0
    %v162 = vadd.f32 %v69, %v161
    %163 = vmatmul.f32.gmra.mxu0 %v100
    %v164 = vpop.f32.mrf.mxu0
    %v165 = vadd.f32 %v69, %v164
    %166 = vmatmul.f32.gmra.mxu0 %v103
    %v167 = vpop.f32.mrf.mxu0
    %v168 = vadd.f32 %v69, %v167
    %169 = vmatmul.f32.gmra.mxu0 %v106
    %v170 = vpop.f32.mrf.mxu0
    %v171 = vadd.f32 %v69, %v170
    %172 = vmatmul.f32.gmra.mxu0 %v109
    %v173 = vpop.f32.mrf.mxu0
    %v174 = vadd.f32 %v69, %v173
    %175 = vmatmul.f32.gmra.mxu0 %v112
    %v176 = vpop.f32.mrf.mxu0
    %v177 = vadd.f32 %v69, %v176
    %178 = vmatmul.f32.gmra.mxu0 %v115
    %v179 = vpop.f32.mrf.mxu0
    %v180 = vadd.f32 %v69, %v179
    %181 = vmatmul.f32.gmra.mxu0 %v118
    %v182 = vpop.f32.mrf.mxu0
    %v183 = vadd.f32 %v69, %v182
    %184 = vdwg.mxu0
    %v185 = vmax.f32 %v138, 0.0
    %v186 = vmax.f32 %v141, 0.0
    %v187 = vmax.f32 %v144, 0.0
    %v188 = vmax.f32 %v147, 0.0
    %v189 = vmax.f32 %v150, 0.0
    %v190 = vmax.f32 %v153, 0.0
    %v191 = vmax.f32 %v156, 0.0
    %v192 = vmax.f32 %v159, 0.0
    %v193 = vmax.f32 %v162, 0.0
    %v194 = vmax.f32 %v165, 0.0
    %v195 = vmax.f32 %v168, 0.0
    %v196 = vmax.f32 %v171, 0.0
    %v197 = vmax.f32 %v174, 0.0
    %v198 = vmax.f32 %v177, 0.0
    %v199 = vmax.f32 %v180, 0.0
    %v200 = vmax.f32 %v183, 0.0
    %v201 = vld [vmem:[%s3] sm:$0xff]
    %v202 = vld [vmem:[%s3 + $0x8] sm:$0xff]
    %v203 = vld [vmem:[%s3 + $0x10] sm:$0xff]
    %v204 = vld [vmem:[%s3 + $0x18] sm:$0xff]
    %v205 = vld [vmem:[%s3 + $0x20] sm:$0xff]
    %v206 = vld [vmem:[%s3 + $0x28] sm:$0xff]
    %v207 = vld [vmem:[%s3 + $0x30] sm:$0xff]
    %v208 = vld [vmem:[%s3 + $0x38] sm:$0xff]
    %v209 = vld [vmem:[%s3 + $0x40] sm:$0xff]
    %v210 = vld [vmem:[%s3 + $0x48] sm:$0xff]
    %v211 = vld [vmem:[%s3 + $0x50] sm:$0xff]
    %v212 = vld [vmem:[%s3 + $0x58] sm:$0xff]
    %v213 = vld [vmem:[%s3 + $0x60] sm:$0xff]
    %v214 = vld [vmem:[%s3 + $0x68] sm:$0xff]
    %v215 = vld [vmem:[%s3 + $0x70] sm:$0xff]
    %v216 = vld [vmem:[%s3 + $0x78] sm:$0xff]
    %v217 = vld [vmem:[%s4] sm:$0x1]
    %v219 = vperm.slane %v217, 0
    %221 = vmatpush.msra.mxu0 %v216
    %222 = vmatpush.msra.mxu0 %v215
    %223 = vmatpush.msra.mxu0 %v214
    %224 = vmatpush.msra.mxu0 %v213
    %225 = vmatpush.msra.mxu0 %v212
    %226 = vmatpush.msra.mxu0 %v211
    %227 = vmatpush.msra.mxu0 %v210
    %228 = vmatpush.msra.mxu0 %v209
    %229 = vmatpush.msra.mxu0 %v208
    %230 = vmatpush.msra.mxu0 %v207
    %231 = vmatpush.msra.mxu0 %v206
    %232 = vmatpush.msra.mxu0 %v205
    %233 = vmatpush.msra.mxu0 %v204
    %234 = vmatpush.msra.mxu0 %v203
    %235 = vmatpush.msra.mxu0 %v202
    %236 = vmatpush.msra.mxu0 %v201
    %237 = vmatmul.f32.gmra.mxu0 %v185
    %v238 = vpop.f32.mrf.mxu0
    %v239 = vadd.f32 %v219, %v238
    %240 = vmatmul.f32.gmra.mxu0 %v186
    %v241 = vpop.f32.mrf.mxu0
    %v242 = vadd.f32 %v219, %v241
    %243 = vmatmul.f32.gmra.mxu0 %v187
    %v244 = vpop.f32.mrf.mxu0
    %v245 = vadd.f32 %v219, %v244
    %246 = vmatmul.f32.gmra.mxu0 %v188
    %v247 = vpop.f32.mrf.mxu0
    %v248 = vadd.f32 %v219, %v247
    %249 = vmatmul.f32.gmra.mxu0 %v189
    %v250 = vpop.f32.mrf.mxu0
    %v251 = vadd.f32 %v219, %v250
    %252 = vmatmul.f32.gmra.mxu0 %v190
    %v253 = vpop.f32.mrf.mxu0
    %v254 = vadd.f32 %v219, %v253
    %255 = vmatmul.f32.gmra.mxu0 %v191
    %v256 = vpop.f32.mrf.mxu0
    %v257 = vadd.f32 %v219, %v256
    %258 = vmatmul.f32.gmra.mxu0 %v192
    %v259 = vpop.f32.mrf.mxu0
    %v260 = vadd.f32 %v219, %v259
    %261 = vmatmul.f32.gmra.mxu0 %v193
    %v262 = vpop.f32.mrf.mxu0
    %v263 = vadd.f32 %v219, %v262
    %264 = vmatmul.f32.gmra.mxu0 %v194
    %v265 = vpop.f32.mrf.mxu0
    %v266 = vadd.f32 %v219, %v265
    %267 = vmatmul.f32.gmra.mxu0 %v195
    %v268 = vpop.f32.mrf.mxu0
    %v269 = vadd.f32 %v219, %v268
    %270 = vmatmul.f32.gmra.mxu0 %v196
    %v271 = vpop.f32.mrf.mxu0
    %v272 = vadd.f32 %v219, %v271
    %273 = vmatmul.f32.gmra.mxu0 %v197
    %v274 = vpop.f32.mrf.mxu0
    %v275 = vadd.f32 %v219, %v274
    %276 = vmatmul.f32.gmra.mxu0 %v198
    %v277 = vpop.f32.mrf.mxu0
    %v278 = vadd.f32 %v219, %v277
    %279 = vmatmul.f32.gmra.mxu0 %v199
    %v280 = vpop.f32.mrf.mxu0
    %v281 = vadd.f32 %v219, %v280
    %282 = vmatmul.f32.gmra.mxu0 %v200
    %v283 = vpop.f32.mrf.mxu0
    %v284 = vadd.f32 %v219, %v283
    %285 = vdwg.mxu0
    %v286 = vmax.f32 %v239, 0.0
    %v287 = vmax.f32 %v242, 0.0
    %v288 = vmax.f32 %v245, 0.0
    %v289 = vmax.f32 %v248, 0.0
    %v290 = vmax.f32 %v251, 0.0
    %v291 = vmax.f32 %v254, 0.0
    %v292 = vmax.f32 %v257, 0.0
    %v293 = vmax.f32 %v260, 0.0
    %v294 = vmax.f32 %v263, 0.0
    %v295 = vmax.f32 %v266, 0.0
    %v296 = vmax.f32 %v269, 0.0
    %v297 = vmax.f32 %v272, 0.0
    %v298 = vmax.f32 %v275, 0.0
    %v299 = vmax.f32 %v278, 0.0
    %v300 = vmax.f32 %v281, 0.0
    %v301 = vmax.f32 %v284, 0.0
    %v302 = vld [vmem:[#allocation2] sm:$0xff]
    %v303 = vld [vmem:[#allocation2 + $0x8] sm:$0xff]
    %v304 = vld [vmem:[#allocation2 + $0x10] sm:$0xff]
    %v305 = vld [vmem:[#allocation2 + $0x18] sm:$0xff]
    %v306 = vld [vmem:[#allocation2 + $0x20] sm:$0xff]
    %v307 = vld [vmem:[#allocation2 + $0x28] sm:$0xff]
    %v308 = vld [vmem:[#allocation2 + $0x30] sm:$0xff]
    %v309 = vld [vmem:[#allocation2 + $0x38] sm:$0xff]
    %v310 = vld [vmem:[#allocation2 + $0x40] sm:$0xff]
    %v311 = vld [vmem:[#allocation2 + $0x48] sm:$0xff]
    %v312 = vld [vmem:[#allocation2 + $0x50] sm:$0xff]
    %v313 = vld [vmem:[#allocation2 + $0x58] sm:$0xff]
    %v314 = vld [vmem:[#allocation2 + $0x60] sm:$0xff]
    %v315 = vld [vmem:[#allocation2 + $0x68] sm:$0xff]
    %v316 = vld [vmem:[#allocation2 + $0x70] sm:$0xff]
    %v317 = vld [vmem:[#allocation2 + $0x78] sm:$0xff]
    %v318 = vld [vmem:[%s6] sm:$0x1]
    %v320 = vperm.slane %v318, 0
    %322 = vmatpush.msra.mxu0 %v317
    %323 = vmatpush.msra.mxu0 %v316
    %324 = vmatpush.msra.mxu0 %v315
    %325 = vmatpush.msra.mxu0 %v314
    %326 = vmatpush.msra.mxu0 %v313
    %327 = vmatpush.msra.mxu0 %v312
    %328 = vmatpush.msra.mxu0 %v311
    %329 = vmatpush.msra.mxu0 %v310
    %330 = vmatpush.msra.mxu0 %v309
    %331 = vmatpush.msra.mxu0 %v308
    %332 = vmatpush.msra.mxu0 %v307
    %333 = vmatpush.msra.mxu0 %v306
    %334 = vmatpush.msra.mxu0 %v305
    %335 = vmatpush.msra.mxu0 %v304
    %336 = vmatpush.msra.mxu0 %v303
    %337 = vmatpush.msra.mxu0 %v302
    %338 = vmatmul.f32.gmra.mxu0 %v286
    %v339 = vpop.f32.mrf.mxu0
    %v340 = vadd.f32 %v320, %v339
    %341 = vmatmul.f32.gmra.mxu0 %v287
    %v342 = vpop.f32.mrf.mxu0
    %v343 = vadd.f32 %v320, %v342
    %344 = vmatmul.f32.gmra.mxu0 %v288
    %v345 = vpop.f32.mrf.mxu0
    %v346 = vadd.f32 %v320, %v345
    %347 = vmatmul.f32.gmra.mxu0 %v289
    %v348 = vpop.f32.mrf.mxu0
    %v349 = vadd.f32 %v320, %v348
    %350 = vmatmul.f32.gmra.mxu0 %v290
    %v351 = vpop.f32.mrf.mxu0
    %v352 = vadd.f32 %v320, %v351
    %353 = vmatmul.f32.gmra.mxu0 %v291
    %v354 = vpop.f32.mrf.mxu0
    %v355 = vadd.f32 %v320, %v354
    %356 = vmatmul.f32.gmra.mxu0 %v292
    %v357 = vpop.f32.mrf.mxu0
    %v358 = vadd.f32 %v320, %v357
    %359 = vmatmul.f32.gmra.mxu0 %v293
    %v360 = vpop.f32.mrf.mxu0
    %v361 = vadd.f32 %v320, %v360
    %362 = vmatmul.f32.gmra.mxu0 %v294
    %v363 = vpop.f32.mrf.mxu0
    %v364 = vadd.f32 %v320, %v363
    %365 = vmatmul.f32.gmra.mxu0 %v295
    %v366 = vpop.f32.mrf.mxu0
    %v367 = vadd.f32 %v320, %v366
    %368 = vmatmul.f32.gmra.mxu0 %v296
    %v369 = vpop.f32.mrf.mxu0
    %v370 = vadd.f32 %v320, %v369
    %371 = vmatmul.f32.gmra.mxu0 %v297
    %v372 = vpop.f32.mrf.mxu0
    %v373 = vadd.f32 %v320, %v372
    %374 = vmatmul.f32.gmra.mxu0 %v298
    %v375 = vpop.f32.mrf.mxu0
    %v376 = vadd.f32 %v320, %v375
    %377 = vmatmul.f32.gmra.mxu0 %v299
    %v378 = vpop.f32.mrf.mxu0
    %v379 = vadd.f32 %v320, %v378
    %380 = vmatmul.f32.gmra.mxu0 %v300
    %v381 = vpop.f32.mrf.mxu0
    %v382 = vadd.f32 %v320, %v381
    %383 = vmatmul.f32.gmra.mxu0 %v301
    %v384 = vpop.f32.mrf.mxu0
    %v385 = vadd.f32 %v320, %v384
    %386 = vdwg.mxu0
    %v387 = vld [vmem:[%s7] sm:$0x1]
    %v389 = vperm.slane %v387, 0
    %v391 = vadd.f32 %v340, %v389
    %v392 = vadd.f32 %v343, %v389
    %v393 = vadd.f32 %v346, %v389
    %v394 = vadd.f32 %v349, %v389
    %v395 = vadd.f32 %v352, %v389
    %v396 = vadd.f32 %v355, %v389
    %v397 = vadd.f32 %v358, %v389
    %v398 = vadd.f32 %v361, %v389
    %v399 = vadd.f32 %v364, %v389
    %v400 = vadd.f32 %v367, %v389
    %v401 = vadd.f32 %v370, %v389
    %v402 = vadd.f32 %v373, %v389
    %v403 = vadd.f32 %v376, %v389
    %v404 = vadd.f32 %v379, %v389
    %v405 = vadd.f32 %v382, %v389
    %v406 = vadd.f32 %v385, %v389
    %407 = vmax.xlane.f32.xlu0 %v391
    %v408 = vpop.xlane.xlu0 %407
    %409 = vmax.xlane.f32.xlu0 %v392
    %v410 = vpop.xlane.xlu0 %409
    %411 = vmax.xlane.f32.xlu0 %v393
    %v412 = vpop.xlane.xlu0 %411
    %413 = vmax.xlane.f32.xlu0 %v394
    %v414 = vpop.xlane.xlu0 %413
    %415 = vmax.xlane.f32.xlu0 %v395
    %v416 = vpop.xlane.xlu0 %415
    %417 = vmax.xlane.f32.xlu0 %v396
    %v418 = vpop.xlane.xlu0 %417
    %419 = vmax.xlane.f32.xlu0 %v397
    %v420 = vpop.xlane.xlu0 %419
    %421 = vmax.xlane.f32.xlu0 %v398
    %v422 = vpop.xlane.xlu0 %421
    %423 = vmax.xlane.f32.xlu0 %v399
    %v424 = vpop.xlane.xlu0 %423
    %425 = vmax.xlane.f32.xlu0 %v400
    %v426 = vpop.xlane.xlu0 %425
    %427 = vmax.xlane.f32.xlu0 %v401
    %v428 = vpop.xlane.xlu0 %427
    %429 = vmax.xlane.f32.xlu0 %v402
    %v430 = vpop.xlane.xlu0 %429
    %431 = vmax.xlane.f32.xlu0 %v403
    %v432 = vpop.xlane.xlu0 %431
    %433 = vmax.xlane.f32.xlu0 %v404
    %v434 = vpop.xlane.xlu0 %433
    %435 = vmax.xlane.f32.xlu0 %v405
    %v436 = vpop.xlane.xlu0 %435
    %437 = vmax.xlane.f32.xlu0 %v406
    %v438 = vpop.xlane.xlu0 %437
    %v439 = vsub.f32 %v391, %v408
    %v440 = vsub.f32 %v392, %v410
    %v441 = vsub.f32 %v393, %v412
    %v442 = vsub.f32 %v394, %v414
    %v443 = vsub.f32 %v395, %v416
    %v444 = vsub.f32 %v396, %v418
    %v445 = vsub.f32 %v397, %v420
    %v446 = vsub.f32 %v398, %v422
    %v447 = vsub.f32 %v399, %v424
    %v448 = vsub.f32 %v400, %v426
    %v449 = vsub.f32 %v401, %v428
    %v450 = vsub.f32 %v402, %v430
    %v451 = vsub.f32 %v403, %v432
    %v452 = vsub.f32 %v404, %v434
    %v453 = vsub.f32 %v405, %v436
    %v454 = vsub.f32 %v406, %v438
    %v455 = vmul.f32 %v439, 1.442695
    %v456 = vpow.pop %v455
    %v457 = vmul.f32 %v440, 1.442695
    %v458 = vpow.pop %v457
    %v459 = vmul.f32 %v441, 1.442695
    %v460 = vpow.pop %v459
    %v461 = vmul.f32 %v442, 1.442695
    %v462 = vpow.pop %v461
    %v463 = vmul.f32 %v443, 1.442695
    %v464 = vpow.pop %v463
    %v465 = vmul.f32 %v444, 1.442695
    %v466 = vpow.pop %v465
    %v467 = vmul.f32 %v445, 1.442695
    %v468 = vpow.pop %v467
    %v469 = vmul.f32 %v446, 1.442695
    %v470 = vpow.pop %v469
    %v471 = vmul.f32 %v447, 1.442695
    %v472 = vpow.pop %v471
    %v473 = vmul.f32 %v448, 1.442695
    %v474 = vpow.pop %v473
    %v475 = vmul.f32 %v449, 1.442695
    %v476 = vpow.pop %v475
    %v477 = vmul.f32 %v450, 1.442695
    %v478 = vpow.pop %v477
    %v479 = vmul.f32 %v451, 1.442695
    %v480 = vpow.pop %v479
    %v481 = vmul.f32 %v452, 1.442695
    %v482 = vpow.pop %v481
    %v483 = vmul.f32 %v453, 1.442695
    %v484 = vpow.pop %v483
    %v485 = vmul.f32 %v454, 1.442695
    %v486 = vpow.pop %v485
    %487 = vadd.xlane.f32.xlu0 %v456
    %v488 = vpop.xlane.xlu0 %487
    %489 = vadd.xlane.f32.xlu0 %v458
    %v490 = vpop.xlane.xlu0 %489
    %491 = vadd.xlane.f32.xlu0 %v460
    %v492 = vpop.xlane.xlu0 %491
    %493 = vadd.xlane.f32.xlu0 %v462
    %v494 = vpop.xlane.xlu0 %493
    %495 = vadd.xlane.f32.xlu0 %v464
    %v496 = vpop.xlane.xlu0 %495
    %497 = vadd.xlane.f32.xlu0 %v466
    %v498 = vpop.xlane.xlu0 %497
    %499 = vadd.xlane.f32.xlu0 %v468
    %v500 = vpop.xlane.xlu0 %499
    %501 = vadd.xlane.f32.xlu0 %v470
    %v502 = vpop.xlane.xlu0 %501
    %503 = vadd.xlane.f32.xlu0 %v472
    %v504 = vpop.xlane.xlu0 %503
    %505 = vadd.xlane.f32.xlu0 %v474
    %v506 = vpop.xlane.xlu0 %505
    %507 = vadd.xlane.f32.xlu0 %v476
    %v508 = vpop.xlane.xlu0 %507
    %509 = vadd.xlane.f32.xlu0 %v478
    %v510 = vpop.xlane.xlu0 %509
    %511 = vadd.xlane.f32.xlu0 %v480
    %v512 = vpop.xlane.xlu0 %511
    %513 = vadd.xlane.f32.xlu0 %v482
    %v514 = vpop.xlane.xlu0 %513
    %515 = vadd.xlane.f32.xlu0 %v484
    %v516 = vpop.xlane.xlu0 %515
    %517 = vadd.xlane.f32.xlu0 %v486
    %v518 = vpop.xlane.xlu0 %517
    %v519 = vrcp.pop %v488
    %v520 = vmul.f32 %v488, %v519
    %v521 = vsub.f32 1.0, %v520
    %v522 = vmul.f32 %v519, %v521
    %v523 = vadd.f32 %v519, %v522
    %vm524 = vweird.f32 %v488
    %vm525 = vweird.f32 %v519
    %vm526 = vmor %vm524, %vm525
    %v527 = vsel %vm526, %v519, %v523
    %v528 = vand.u32 2147483647, %v488
    %vm529 = vcmp.eq.f32.partialorder %v528, 8.507059e+37
    %v530 = vand.u32 %v488, 2147483648
    %v531 = vor.u32 1.1754944e-38, %v530
    %v532 = vsel %vm529, %v531, %v527
    %v533 = vrcp.pop %v490
    %v534 = vmul.f32 %v490, %v533
    %v535 = vsub.f32 1.0, %v534
    %v536 = vmul.f32 %v533, %v535
    %v537 = vadd.f32 %v533, %v536
    %vm538 = vweird.f32 %v490
    %vm539 = vweird.f32 %v533
    %vm540 = vmor %vm538, %vm539
    %v541 = vsel %vm540, %v533, %v537
    %v542 = vand.u32 2147483647, %v490
    %vm543 = vcmp.eq.f32.partialorder %v542, 8.507059e+37
    %v544 = vand.u32 %v490, 2147483648
    %v545 = vor.u32 1.1754944e-38, %v544
    %v546 = vsel %vm543, %v545, %v541
    %v547 = vrcp.pop %v492
    %v548 = vmul.f32 %v492, %v547
    %v549 = vsub.f32 1.0, %v548
    %v550 = vmul.f32 %v547, %v549
    %v551 = vadd.f32 %v547, %v550
    %vm552 = vweird.f32 %v492
    %vm553 = vweird.f32 %v547
    %vm554 = vmor %vm552, %vm553
    %v555 = vsel %vm554, %v547, %v551
    %v556 = vand.u32 2147483647, %v492
    %vm557 = vcmp.eq.f32.partialorder %v556, 8.507059e+37
    %v558 = vand.u32 %v492, 2147483648
    %v559 = vor.u32 1.1754944e-38, %v558
    %v560 = vsel %vm557, %v559, %v555
    %v561 = vrcp.pop %v494
    %v562 = vmul.f32 %v494, %v561
    %v563 = vsub.f32 1.0, %v562
    %v564 = vmul.f32 %v561, %v563
    %v565 = vadd.f32 %v561, %v564
    %vm566 = vweird.f32 %v494
    %vm567 = vweird.f32 %v561
    %vm568 = vmor %vm566, %vm567
    %v569 = vsel %vm568, %v561, %v565
    %v570 = vand.u32 2147483647, %v494
    %vm571 = vcmp.eq.f32.partialorder %v570, 8.507059e+37
    %v572 = vand.u32 %v494, 2147483648
    %v573 = vor.u32 1.1754944e-38, %v572
    %v574 = vsel %vm571, %v573, %v569
    %v575 = vrcp.pop %v496
    %v576 = vmul.f32 %v496, %v575
    %v577 = vsub.f32 1.0, %v576
    %v578 = vmul.f32 %v575, %v577
    %v579 = vadd.f32 %v575, %v578
    %vm580 = vweird.f32 %v496
    %vm581 = vweird.f32 %v575
    %vm582 = vmor %vm580, %vm581
    %v583 = vsel %vm582, %v575, %v579
    %v584 = vand.u32 2147483647, %v496
    %vm585 = vcmp.eq.f32.partialorder %v584, 8.507059e+37
    %v586 = vand.u32 %v496, 2147483648
    %v587 = vor.u32 1.1754944e-38, %v586
    %v588 = vsel %vm585, %v587, %v583
    %v589 = vrcp.pop %v498
    %v590 = vmul.f32 %v498, %v589
    %v591 = vsub.f32 1.0, %v590
    %v592 = vmul.f32 %v589, %v591
    %v593 = vadd.f32 %v589, %v592
    %vm594 = vweird.f32 %v498
    %vm595 = vweird.f32 %v589
    %vm596 = vmor %vm594, %vm595
    %v597 = vsel %vm596, %v589, %v593
    %v598 = vand.u32 2147483647, %v498
    %vm599 = vcmp.eq.f32.partialorder %v598, 8.507059e+37
    %v600 = vand.u32 %v498, 2147483648
    %v601 = vor.u32 1.1754944e-38, %v600
    %v602 = vsel %vm599, %v601, %v597
    %v603 = vrcp.pop %v500
    %v604 = vmul.f32 %v500, %v603
    %v605 = vsub.f32 1.0, %v604
    %v606 = vmul.f32 %v603, %v605
    %v607 = vadd.f32 %v603, %v606
    %vm608 = vweird.f32 %v500
    %vm609 = vweird.f32 %v603
    %vm610 = vmor %vm608, %vm609
    %v611 = vsel %vm610, %v603, %v607
    %v612 = vand.u32 2147483647, %v500
    %vm613 = vcmp.eq.f32.partialorder %v612, 8.507059e+37
    %v614 = vand.u32 %v500, 2147483648
    %v615 = vor.u32 1.1754944e-38, %v614
    %v616 = vsel %vm613, %v615, %v611
    %v617 = vrcp.pop %v502
    %v618 = vmul.f32 %v502, %v617
    %v619 = vsub.f32 1.0, %v618
    %v620 = vmul.f32 %v617, %v619
    %v621 = vadd.f32 %v617, %v620
    %vm622 = vweird.f32 %v502
    %vm623 = vweird.f32 %v617
    %vm624 = vmor %vm622, %vm623
    %v625 = vsel %vm624, %v617, %v621
    %v626 = vand.u32 2147483647, %v502
    %vm627 = vcmp.eq.f32.partialorder %v626, 8.507059e+37
    %v628 = vand.u32 %v502, 2147483648
    %v629 = vor.u32 1.1754944e-38, %v628
    %v630 = vsel %vm627, %v629, %v625
    %v631 = vrcp.pop %v504
    %v632 = vmul.f32 %v504, %v631
    %v633 = vsub.f32 1.0, %v632
    %v634 = vmul.f32 %v631, %v633
    %v635 = vadd.f32 %v631, %v634
    %vm636 = vweird.f32 %v504
    %vm637 = vweird.f32 %v631
    %vm638 = vmor %vm636, %vm637
    %v639 = vsel %vm638, %v631, %v635
    %v640 = vand.u32 2147483647, %v504
    %vm641 = vcmp.eq.f32.partialorder %v640, 8.507059e+37
    %v642 = vand.u32 %v504, 2147483648
    %v643 = vor.u32 1.1754944e-38, %v642
    %v644 = vsel %vm641, %v643, %v639
    %v645 = vrcp.pop %v506
    %v646 = vmul.f32 %v506, %v645
    %v647 = vsub.f32 1.0, %v646
    %v648 = vmul.f32 %v645, %v647
    %v649 = vadd.f32 %v645, %v648
    %vm650 = vweird.f32 %v506
    %vm651 = vweird.f32 %v645
    %vm652 = vmor %vm650, %vm651
    %v653 = vsel %vm652, %v645, %v649
    %v654 = vand.u32 2147483647, %v506
    %vm655 = vcmp.eq.f32.partialorder %v654, 8.507059e+37
    %v656 = vand.u32 %v506, 2147483648
    %v657 = vor.u32 1.1754944e-38, %v656
    %v658 = vsel %vm655, %v657, %v653
    %v659 = vrcp.pop %v508
    %v660 = vmul.f32 %v508, %v659
    %v661 = vsub.f32 1.0, %v660
    %v662 = vmul.f32 %v659, %v661
    %v663 = vadd.f32 %v659, %v662
    %vm664 = vweird.f32 %v508
    %vm665 = vweird.f32 %v659
    %vm666 = vmor %vm664, %vm665
    %v667 = vsel %vm666, %v659, %v663
    %v668 = vand.u32 2147483647, %v508
    %vm669 = vcmp.eq.f32.partialorder %v668, 8.507059e+37
    %v670 = vand.u32 %v508, 2147483648
    %v671 = vor.u32 1.1754944e-38, %v670
    %v672 = vsel %vm669, %v671, %v667
    %v673 = vrcp.pop %v510
    %v674 = vmul.f32 %v510, %v673
    %v675 = vsub.f32 1.0, %v674
    %v676 = vmul.f32 %v673, %v675
    %v677 = vadd.f32 %v673, %v676
    %vm678 = vweird.f32 %v510
    %vm679 = vweird.f32 %v673
    %vm680 = vmor %vm678, %vm679
    %v681 = vsel %vm680, %v673, %v677
    %v682 = vand.u32 2147483647, %v510
    %vm683 = vcmp.eq.f32.partialorder %v682, 8.507059e+37
    %v684 = vand.u32 %v510, 2147483648
    %v685 = vor.u32 1.1754944e-38, %v684
    %v686 = vsel %vm683, %v685, %v681
    %v687 = vrcp.pop %v512
    %v688 = vmul.f32 %v512, %v687
    %v689 = vsub.f32 1.0, %v688
    %v690 = vmul.f32 %v687, %v689
    %v691 = vadd.f32 %v687, %v690
    %vm692 = vweird.f32 %v512
    %vm693 = vweird.f32 %v687
    %vm694 = vmor %vm692, %vm693
    %v695 = vsel %vm694, %v687, %v691
    %v696 = vand.u32 2147483647, %v512
    %vm697 = vcmp.eq.f32.partialorder %v696, 8.507059e+37
    %v698 = vand.u32 %v512, 2147483648
    %v699 = vor.u32 1.1754944e-38, %v698
    %v700 = vsel %vm697, %v699, %v695
    %v701 = vrcp.pop %v514
    %v702 = vmul.f32 %v514, %v701
    %v703 = vsub.f32 1.0, %v702
    %v704 = vmul.f32 %v701, %v703
    %v705 = vadd.f32 %v701, %v704
    %vm706 = vweird.f32 %v514
    %vm707 = vweird.f32 %v701
    %vm708 = vmor %vm706, %vm707
    %v709 = vsel %vm708, %v701, %v705
    %v710 = vand.u32 2147483647, %v514
    %vm711 = vcmp.eq.f32.partialorder %v710, 8.507059e+37
    %v712 = vand.u32 %v514, 2147483648
    %v713 = vor.u32 1.1754944e-38, %v712
    %v714 = vsel %vm711, %v713, %v709
    %v715 = vrcp.pop %v516
    %v716 = vmul.f32 %v516, %v715
    %v717 = vsub.f32 1.0, %v716
    %v718 = vmul.f32 %v715, %v717
    %v719 = vadd.f32 %v715, %v718
    %vm720 = vweird.f32 %v516
    %vm721 = vweird.f32 %v715
    %vm722 = vmor %vm720, %vm721
    %v723 = vsel %vm722, %v715, %v719
    %v724 = vand.u32 2147483647, %v516
    %vm725 = vcmp.eq.f32.partialorder %v724, 8.507059e+37
    %v726 = vand.u32 %v516, 2147483648
    %v727 = vor.u32 1.1754944e-38, %v726
    %v728 = vsel %vm725, %v727, %v723
    %v729 = vrcp.pop %v518
    %v730 = vmul.f32 %v518, %v729
    %v731 = vsub.f32 1.0, %v730
    %v732 = vmul.f32 %v729, %v731
    %v733 = vadd.f32 %v729, %v732
    %vm734 = vweird.f32 %v518
    %vm735 = vweird.f32 %v729
    %vm736 = vmor %vm734, %vm735
    %v737 = vsel %vm736, %v729, %v733
    %v738 = vand.u32 2147483647, %v518
    %vm739 = vcmp.eq.f32.partialorder %v738, 8.507059e+37
    %v740 = vand.u32 %v518, 2147483648
    %v741 = vor.u32 1.1754944e-38, %v740
    %v742 = vsel %vm739, %v741, %v737
    %v743 = vmul.f32 %v456, %v532
    %v744 = vmul.f32 %v458, %v546
    %v745 = vmul.f32 %v460, %v560
    %v746 = vmul.f32 %v462, %v574
    %v747 = vmul.f32 %v464, %v588
    %v748 = vmul.f32 %v466, %v602
    %v749 = vmul.f32 %v468, %v616
    %v750 = vmul.f32 %v470, %v630
    %v751 = vmul.f32 %v472, %v644
    %v752 = vmul.f32 %v474, %v658
    %v753 = vmul.f32 %v476, %v672
    %v754 = vmul.f32 %v478, %v686
    %v755 = vmul.f32 %v480, %v700
    %v756 = vmul.f32 %v482, %v714
    %v757 = vmul.f32 %v484, %v728
    %v758 = vmul.f32 %v486, %v742
    %v759 = vld [vmem:[%s8] sm:$0x1]
    %v761 = vperm.slane %v759, 0
    %v763 = vmul.f32 %v340, %v761
    %v764 = vmul.f32 %v343, %v761
    %v765 = vmul.f32 %v346, %v761
    %v766 = vmul.f32 %v349, %v761
    %v767 = vmul.f32 %v352, %v761
    %v768 = vmul.f32 %v355, %v761
    %v769 = vmul.f32 %v358, %v761
    %v770 = vmul.f32 %v361, %v761
    %v771 = vmul.f32 %v364, %v761
    %v772 = vmul.f32 %v367, %v761
    %v773 = vmul.f32 %v370, %v761
    %v774 = vmul.f32 %v373, %v761
    %v775 = vmul.f32 %v376, %v761
    %v776 = vmul.f32 %v379, %v761
    %v777 = vmul.f32 %v382, %v761
    %v778 = vmul.f32 %v385, %v761
    %v779 = vadd.f32 %v743, %v763
    %v780 = vadd.f32 %v744, %v764
    %v781 = vadd.f32 %v745, %v765
    %v782 = vadd.f32 %v746, %v766
    %v783 = vadd.f32 %v747, %v767
    %v784 = vadd.f32 %v748, %v768
    %v785 = vadd.f32 %v749, %v769
    %v786 = vadd.f32 %v750, %v770
    %v787 = vadd.f32 %v751, %v771
    %v788 = vadd.f32 %v752, %v772
    %v789 = vadd.f32 %v753, %v773
    %v790 = vadd.f32 %v754, %v774
    %v791 = vadd.f32 %v755, %v775
    %v792 = vadd.f32 %v756, %v776
    %v793 = vadd.f32 %v757, %v777
    %v794 = vadd.f32 %v758, %v778
    %795 = vst [vmem:[#allocation5] sm:$0xff] %v779
    %796 = vst [vmem:[#allocation5 + $0x8] sm:$0xff] %v780
    %797 = vst [vmem:[#allocation5 + $0x10] sm:$0xff] %v781
    %798 = vst [vmem:[#allocation5 + $0x18] sm:$0xff] %v782
    %799 = vst [vmem:[#allocation5 + $0x20] sm:$0xff] %v783
    %800 = vst [vmem:[#allocation5 + $0x28] sm:$0xff] %v784
    %801 = vst [vmem:[#allocation5 + $0x30] sm:$0xff] %v785
    %802 = vst [vmem:[#allocation5 + $0x38] sm:$0xff] %v786
    %803 = vst [vmem:[#allocation5 + $0x40] sm:$0xff] %v787
    %804 = vst [vmem:[#allocation5 + $0x48] sm:$0xff] %v788
    %805 = vst [vmem:[#allocation5 + $0x50] sm:$0xff] %v789
    %806 = vst [vmem:[#allocation5 + $0x58] sm:$0xff] %v790
    %807 = vst [vmem:[#allocation5 + $0x60] sm:$0xff] %v791
    %808 = vst [vmem:[#allocation5 + $0x68] sm:$0xff] %v792
    %809 = vst [vmem:[#allocation5 + $0x70] sm:$0xff] %v793
    %810 = vst [vmem:[#allocation5 + $0x78] sm:$0xff] %v794
    // Predicated region
    $region42: #{tpu_custom_call.1} parent=1 // pred_check
      _
    $region43: #{tpu_custom_call.1} parent=1 // pred_check_branch
      %812 = sbr.rel (0) target = $region45
    $region44: #{tpu_custom_call.1} parent=1 // pred_region
      %814 = vsyncadd [#allocation4], 0
      %s815 = sshll.u32 [#allocation5], 4
      %s816 = int_to_ptr.vmem [resolvable:$true] %s815
      %s817 = sshll.u32 %s9, 4
      %s818 = int_to_ptr.hbm [resolvable:$true] %s817
      %823 = dma.vmem_to_hbm [thread:$0]  %s816, 2048, %s818, [#allocation4], 128, 128, 8
    $region45: #{tpu_custom_call.1} parent=1 // pred_fallthru
      _
    // Predicated region
    $region46: #{tpu_custom_call.1} parent=1 // pred_check
      _
    $region47: #{tpu_custom_call.1} parent=1 // pred_check_branch
      %825 = sbr.rel (0) target = $region49
    $region48: #{tpu_custom_call.1} parent=1 // pred_region
      %827 = dma.done [#allocation4], 2048
    $region49: #{tpu_custom_call.1} parent=1 // pred_fallthru
      _
    %828 = vsyncpa [#allocation3], 1
    %829 = vsyncpa [#allocation4], 1

</llo_original>
